<compile_context>
chip_gen: v6e
topology: v6e:2x2x1
jax: 0.10.0
libtpu: 0.0.40
codegen_flags: <defaults>
</compile_context>

<pallas_src>
import jax
import jax.numpy as jnp
from jax.experimental import pallas as pl
from jax.experimental.pallas import tpu as pltpu


def _make_gru_kernel(*, tc, hd, n_chains, pad_t, t_total):
    """Builds the (batch-block, time-chunk) grid-step kernel.

    Kernel refs:
      x_ref    : (Tc, Bb, E)   bf16  embedded tokens, time-major
      wih_ref  : (E, 3H)       bf16  fused input->hidden weights (r|z|n)
      whh_ref  : (H, 3H)       bf16  fused hidden->hidden weights (r|z|n)
      bih_ref  : (1, 3H)       f32   b_ih with b_hh[r], b_hh[z] pre-folded in
      bhhn_ref : (1, H)        f32   b_hh[n] (must stay inside r*(...))
      wfc_ref  : (H, O)        bf16  fc weight (transposed torch layout)
      bfc_ref  : (1, O)        f32   fc bias
      out_ref  : (Bb, O)       f32   sigmoid(fc(h_T)), written on last chunk
      h_ref    : (Bb, H)       f32   hidden state carried across time chunks
      gi_ref   : (Tc, Bb, 3H)  f32   hoisted input-projection scratch
    """

    def kernel(x_ref, wih_ref, whh_ref, bih_ref, bhhn_ref, wfc_ref, bfc_ref,
               out_ref, h_ref, gi_ref):
        t_blk = pl.program_id(1)
        n_t = pl.num_programs(1)
        _, bb, e = x_ref.shape
        bh = bb // n_chains

        # h_0 = 0 (PyTorch default); re-init whenever a new batch block starts.
        @pl.when(t_blk == 0)
        def _init():
            h_ref[...] = jnp.zeros_like(h_ref)

        # Hoisted input projection: one big matmul + one bias add per chunk
        # (the r/z hidden biases were folded into bih in the wrapper).
        x2d = x_ref[...].reshape(tc * bb, e)
        gi = (jnp.dot(x2d, wih_ref[...], preferred_element_type=jnp.float32)
              + bih_ref[...])
        gi_ref[...] = gi.reshape(tc, bb, 3 * hd)

        whh = whh_ref[...]
        # Hoisted broadcast of the n-gate hidden bias (JAX does not CSE it).
        bhh_n = jnp.broadcast_to(bhhn_ref[...], (bh, hd))

        # Independent per-chain hidden states: the chains share weights but
        # have no data dependence, letting the scheduler overlap one chain's
        # MXU matmul with the other's EUP/VPU gate math.
        hs = [h_ref[pl.ds(c * bh, bh), :] for c in range(n_chains)]

        for t in range(tc):
            gi_t = gi_ref[t]                      # (Bb, 3H) f32, one load
            keep = None
            if pad_t > 0 and t >= tc - pad_t:
                # Ragged last chunk: padded steps must not update h.
                keep = ((t_blk * tc + t) < t_total).astype(jnp.float32)
            new_hs = []
            for c in range(n_chains):
                h = hs[c]
                gi_c = gi_t[c * bh:(c + 1) * bh, :]
                gh = jnp.dot(h.astype(whh.dtype), whh,
                             preferred_element_type=jnp.float32)
                rz = jax.nn.sigmoid(gi_c[:, :2 * hd] + gh[:, :2 * hd])
                r = rz[:, :hd]
                z = rz[:, hd:]
                n = jnp.tanh(gi_c[:, 2 * hd:] + r * (gh[:, 2 * hd:] + bhh_n))
                h_new = n + z * (h - n)
                if keep is not None:
                    h_new = h + keep * (h_new - h)
                new_hs.append(h_new)
            hs = new_hs

        for c in range(n_chains):
            h_ref[pl.ds(c * bh, bh), :] = hs[c]

        # Final chunk: fc + sigmoid on the last hidden state.
        @pl.when(t_blk == n_t - 1)
        def _final():
            h_t = h_ref[...].astype(wfc_ref.dtype)
            logits = (jnp.dot(h_t, wfc_ref[...],
                              preferred_element_type=jnp.float32)
                      + bfc_ref[...])
            out_ref[...] = jax.nn.sigmoid(logits)

    return kernel


def _round_up(x, m):
    return (x + m - 1) // m * m


def classifier_rnn_forward(index_seq, params, *, seq_chunk=16):
    """JAX/Pallas mirror of ClassifierRNNType.forward (GRU, unidirectional)."""
    emb_table = params["embedding"]          # (V, E)
    w_ih = params["weight_ih"]               # (3H, E)  torch nn.GRU layout
    w_hh = params["weight_hh"]               # (3H, H)
    b_ih = params["bias_ih"]                 # (3H,)
    b_hh = params["bias_hh"]                 # (3H,)
    w_fc = params["fc_weight"]               # (O, H)
    b_fc = params["fc_bias"]                 # (O,)

    B, T = index_seq.shape
    E = emb_table.shape[1]
    H = w_hh.shape[1]
    O = w_fc.shape[0]

    # Embedding gather directly in time-major order (folds the (B,T,E)->(T,B,E)
    # transpose into the gather). Note: jnp.take clamps out-of-range ids.
    x = jnp.take(emb_table, index_seq.T, axis=0).astype(jnp.bfloat16)  # (T,B,E)

    # ---- batch block selection ------------------------------------------
    if B <= 8:
        Bp, Bb = 8, 8
    elif B <= 128:
        Bp = _round_up(B, 16)          # multiple of 16 -> two 8-row sub-chains
        Bb = Bp
    elif B <= 256:
        Bp = _round_up(B, 128)
        Bb = 128                       # >=2 batch blocks at Bp=256 (v7x megacore)
    else:
        Bp = _round_up(B, 256)
        Bb = 256                       # amortize per-step MXU push/drain latency
    n_b = Bp // Bb
    n_chains = 2 if (Bb >= 16 and Bb % 16 == 0) else 1

    # ---- VMEM budget ------------------------------------------------------
    try:
        vmem_cap = int(pltpu.get_tpu_info().vmem_capacity_bytes)
    except Exception:
        vmem_cap = 64 << 20            # conservative (v7x per-core VMEM)

    def _working_set(tc_, bb_):
        return (2 * tc_ * bb_ * E * 2                    # x chunk, 2 buffers, bf16
                + (E * 3 * H + H * 3 * H + H * O) * 2 * 2  # weights bf16, 2 bufs
                + (3 * H + H + O) * 4 * 2                # biases f32, 2 bufs
                + 2 * bb_ * O * 4                        # output block
                + bb_ * H * 4                            # hidden scratch
                + tc_ * bb_ * 3 * H * 4)                 # gi scratch

    # ---- time chunking (fixed tc, masked ragged last chunk) --------------
    tc = max(1, min(seq_chunk, T))
    budget = int(0.6 * vmem_cap)
    while tc > 1 and _working_set(tc, Bb) > budget:
        tc = (tc + 1) // 2
    T_pad = _round_up(T, tc)
    n_t = T_pad // tc
    pad_t = T_pad - T

    if Bp != B or T_pad != T:
        x = jnp.pad(x, ((0, T_pad - T), (0, Bp - B), (0, 0)))

    # ---- fused gate parameters, gate order (r, z, n) as in torch.nn.GRU --
    wih_cat = w_ih.T.astype(jnp.bfloat16)                # (E, 3H)
    whh_cat = w_hh.T.astype(jnp.bfloat16)                # (H, 3H)
    b_ih_f = b_ih.astype(jnp.float32)
    b_hh_f = b_hh.astype(jnp.float32)
    # Fold the r/z hidden biases into the input bias (added once per chunk in
    # the hoisted projection); only the n-gate hidden bias stays per-step.
    bih_fused = jnp.concatenate(
        [b_ih_f[:2 * H] + b_hh_f[:2 * H], b_ih_f[2 * H:]]).reshape(1, 3 * H)
    bhh_n = b_hh_f[2 * H:].reshape(1, H)
    wfc = w_fc.T.astype(jnp.bfloat16)                    # (H, O)
    bfc = b_fc.reshape(1, O).astype(jnp.float32)

    vmem_limit = int(min(int(0.75 * vmem_cap),
                         max(2 * _working_set(tc, Bb) + (4 << 20), 16 << 20)))

    kernel = _make_gru_kernel(tc=tc, hd=H, n_chains=n_chains,
                              pad_t=pad_t, t_total=T)

    out = pl.pallas_call(
        kernel,
        out_shape=jax.ShapeDtypeStruct((Bp, O), jnp.float32),
        grid=(n_b, n_t),
        in_specs=[
            pl.BlockSpec((tc, Bb, E), lambda b, t: (t, b, 0)),
            pl.BlockSpec((E, 3 * H), lambda b, t: (0, 0)),
            pl.BlockSpec((H, 3 * H), lambda b, t: (0, 0)),
            pl.BlockSpec((1, 3 * H), lambda b, t: (0, 0)),
            pl.BlockSpec((1, H), lambda b, t: (0, 0)),
            pl.BlockSpec((H, O), lambda b, t: (0, 0)),
            pl.BlockSpec((1, O), lambda b, t: (0, 0)),
        ],
        out_specs=pl.BlockSpec((Bb, O), lambda b, t: (b, 0)),
        scratch_shapes=[pltpu.VMEM((Bb, H), jnp.float32),
                        pltpu.VMEM((tc, Bb, 3 * H), jnp.float32)],
        compiler_params=pltpu.CompilerParams(
            dimension_semantics=("parallel", "arbitrary"),
            vmem_limit_bytes=vmem_limit),
    )(x, wih_cat, whh_cat, bih_fused, bhh_n, wfc, bfc)

    # PyTorch: hidden is (n_layers, B, H) -> fc(hidden) -> (n_layers, B, O).
    return out[:B][None, :, :]


def _reference_forward(index_seq, params):
    """Pure-JAX f32 reference of the same forward pass (for the sanity check)."""
    emb = jnp.take(params["embedding"], index_seq, axis=0).astype(jnp.float32)
    w_ih = params["weight_ih"].astype(jnp.float32)
    w_hh = params["weight_hh"].astype(jnp.float32)
    b_ih = params["bias_ih"].astype(jnp.float32)
    b_hh = params["bias_hh"].astype(jnp.float32)
    H = w_hh.shape[1]
    B, T, _ = emb.shape
    h = jnp.zeros((B, H), jnp.float32)
    for t in range(T):
        x_t = emb[:, t, :]
        gi = x_t @ w_ih.T + b_ih
        gh = h @ w_hh.T + b_hh
        r = jax.nn.sigmoid(gi[:, :H] + gh[:, :H])
        z = jax.nn.sigmoid(gi[:, H:2 * H] + gh[:, H:2 * H])
        n = jnp.tanh(gi[:, 2 * H:] + r * gh[:, 2 * H:])
        h = (1.0 - z) * n + z * h
    logits = h @ params["fc_weight"].astype(jnp.float32).T + params["fc_bias"]
    return jax.nn.sigmoid(logits)[None]


def init_params(key, vocab_size, embedding_dim, hidden_dim, output_dim):
    ks = jax.random.split(key, 7)
    s = 0.1
    return {
        "embedding": jax.random.uniform(ks[0], (vocab_size, embedding_dim),
                                        jnp.float32, -1.0, 1.0),
        "weight_ih": jax.random.uniform(ks[1], (3 * hidden_dim, embedding_dim),
                                        jnp.float32, -s, s),
        "weight_hh": jax.random.uniform(ks[2], (3 * hidden_dim, hidden_dim),
                                        jnp.float32, -s, s),
        "bias_ih": jax.random.uniform(ks[3], (3 * hidden_dim,),
                                      jnp.float32, -s, s),
        "bias_hh": jax.random.uniform(ks[4], (3 * hidden_dim,),
                                      jnp.float32, -s, s),
        "fc_weight": jax.random.uniform(ks[5], (output_dim, hidden_dim),
                                        jnp.float32, -s, s),
        "fc_bias": jax.random.uniform(ks[6], (output_dim,),
                                      jnp.float32, -s, s),
    }


if __name__ == "__main__":
    VOCAB, EMBED_DIM, HIDDEN_DIM, OUTPUT_DIM = 16, 32, 32, 4

    key = jax.random.PRNGKey(0)
    k_params, k_idx1, k_idx2 = jax.random.split(key, 3)
    params = init_params(k_params, VOCAB, EMBED_DIM, HIDDEN_DIM, OUTPUT_DIM)

    # Test 1: B=2, T=8, seq_chunk=4 -> two full time chunks: exercises the
    # h-carry across grid steps and the pl.when init / finalize paths.
    idx1 = jax.random.randint(k_idx1, (2, 8), 0, VOCAB, dtype=jnp.int32)
    out1 = jax.block_until_ready(classifier_rnn_forward(idx1, params,
                                                        seq_chunk=4))
    assert out1.shape == (1, 2, OUTPUT_DIM), out1.shape
    assert bool(jnp.all(jnp.isfinite(out1)))
    assert bool(jnp.all((out1 >= 0.0) & (out1 <= 1.0)))   # sigmoid range
    ref1 = _reference_forward(idx1, params)
    assert bool(jnp.allclose(out1, ref1, atol=2e-2, rtol=2e-2)), (out1, ref1)

    # Test 2: B=16, T=7, seq_chunk=4 -> ragged (masked) last time chunk and
    # the two-chain interleaved recurrence (batch block of 16 rows).
    idx2 = jax.random.randint(k_idx2, (16, 7), 0, VOCAB, dtype=jnp.int32)
    out2 = jax.block_until_ready(classifier_rnn_forward(idx2, params,
                                                        seq_chunk=4))
    assert out2.shape == (1, 16, OUTPUT_DIM), out2.shape
    ref2 = _reference_forward(idx2, params)
    assert bool(jnp.allclose(out2, ref2, atol=2e-2, rtol=2e-2)), (out2, ref2)

    print("KERNEL_OK")
</pallas_src>

<mosaic_0001>
module attributes {stable_mosaic.version = 11 : i64} {
  func.func @kernel(%arg0: i32, %arg1: i32, %arg2: memref<4x8x32xbf16, #tpu.memory_space<vmem>>, %arg3: memref<32x96xbf16, #tpu.memory_space<vmem>>, %arg4: memref<32x96xbf16, #tpu.memory_space<vmem>>, %arg5: memref<1x96xf32, #tpu.memory_space<vmem>>, %arg6: memref<1x32xf32, #tpu.memory_space<vmem>>, %arg7: memref<32x4xbf16, #tpu.memory_space<vmem>>, %arg8: memref<1x4xf32, #tpu.memory_space<vmem>>, %arg9: memref<8x4xf32, #tpu.memory_space<vmem>>, %arg10: memref<8x32xf32, #tpu.memory_space<vmem>>, %arg11: memref<4x8x96xf32, #tpu.memory_space<vmem>>) attributes {dimension_semantics = [#tpu.dimension_semantics<parallel>, #tpu.dimension_semantics<arbitrary>], iteration_bounds = array<i64: 1, 2>, scalar_prefetch = 0 : i64, scratch_operands = 2 : i64, tpu.core_type = #tpu.core_type<tc>, window_params = [{transform_indices = @transform_0, window_bounds = array<i64: 4, 8, 32>}, {pipeline_mode = #tpu.pipeline_mode<synchronous>, transform_indices = @transform_1, window_bounds = array<i64: 32, 96>}, {pipeline_mode = #tpu.pipeline_mode<synchronous>, transform_indices = @transform_2, window_bounds = array<i64: 32, 96>}, {pipeline_mode = #tpu.pipeline_mode<synchronous>, transform_indices = @transform_3, window_bounds = array<i64: 1, 96>}, {pipeline_mode = #tpu.pipeline_mode<synchronous>, transform_indices = @transform_4, window_bounds = array<i64: 1, 32>}, {pipeline_mode = #tpu.pipeline_mode<synchronous>, transform_indices = @transform_5, window_bounds = array<i64: 32, 4>}, {pipeline_mode = #tpu.pipeline_mode<synchronous>, transform_indices = @transform_6, window_bounds = array<i64: 1, 4>}, {transform_indices = @transform_7, window_bounds = array<i64: 8, 4>}]} {
    %c0_i32 = arith.constant 0 : i32
    %0 = arith.cmpi eq, %arg1, %c0_i32 : i32
    %1 = arith.extui %0 : i1 to i32
    %c0_i32_0 = arith.constant 0 : i32
    %2 = arith.cmpi ne, %1, %c0_i32_0 : i32
    scf.if %2 {
      %cst_36 = arith.constant 0.000000e+00 : f32
      %113 = vector.broadcast %cst_36 : f32 to vector<8x32xf32>
      %c0_37 = arith.constant 0 : index
      %c0_38 = arith.constant 0 : index
      %114 = vector.load %arg10[%c0_37, %c0_38] : memref<8x32xf32, #tpu.memory_space<vmem>>, vector<8x32xf32>
      tpu.vector_store %arg10[%c0_37, %c0_38], %113 {strides = array<i32>} : memref<8x32xf32, #tpu.memory_space<vmem>>, vector<8x32xf32>,
    } else {
    }
    %c0 = arith.constant 0 : index
    %c0_1 = arith.constant 0 : index
    %c0_2 = arith.constant 0 : index
    %3 = vector.load %arg2[%c0, %c0_1, %c0_2] : memref<4x8x32xbf16, #tpu.memory_space<vmem>>, vector<4x8x32xbf16>
    %4 = vector.shape_cast %3 : vector<4x8x32xbf16> to vector<32x32xbf16>
    %c0_3 = arith.constant 0 : index
    %c0_4 = arith.constant 0 : index
    %5 = vector.load %arg3[%c0_3, %c0_4] : memref<32x96xbf16, #tpu.memory_space<vmem>>, vector<32x96xbf16>
    %cst = arith.constant dense<0.000000e+00> : vector<32x96xf32>
    %6 = tpu.matmul %4, %5, %cst {dimension_numbers = #tpu.dot_dimension_numbers<[1], [0], [0], [1], [0, 0, 1, 1], [], []>} : vector<32x32xbf16>, vector<32x96xbf16>, vector<32x96xf32> -> vector<32x96xf32>
    %c0_5 = arith.constant 0 : index
    %c0_6 = arith.constant 0 : index
    %7 = vector.load %arg5[%c0_5, %c0_6] : memref<1x96xf32, #tpu.memory_space<vmem>>, vector<1x96xf32>
    %8 = vector.broadcast %7 : vector<1x96xf32> to vector<32x96xf32>
    %9 = arith.addf %6, %8 : vector<32x96xf32>
    %10 = vector.shape_cast %9 : vector<32x96xf32> to vector<4x8x96xf32>
    %c0_7 = arith.constant 0 : index
    %c0_8 = arith.constant 0 : index
    %c0_9 = arith.constant 0 : index
    %11 = vector.load %arg11[%c0_7, %c0_8, %c0_9] : memref<4x8x96xf32, #tpu.memory_space<vmem>>, vector<4x8x96xf32>
    tpu.vector_store %arg11[%c0_7, %c0_8, %c0_9], %10 {strides = array<i32>} : memref<4x8x96xf32, #tpu.memory_space<vmem>>, vector<4x8x96xf32>,
    %c0_10 = arith.constant 0 : index
    %c0_11 = arith.constant 0 : index
    %12 = vector.load %arg4[%c0_10, %c0_11] : memref<32x96xbf16, #tpu.memory_space<vmem>>, vector<32x96xbf16>
    %c0_12 = arith.constant 0 : index
    %c0_13 = arith.constant 0 : index
    %13 = vector.load %arg6[%c0_12, %c0_13] : memref<1x32xf32, #tpu.memory_space<vmem>>, vector<1x32xf32>
    %14 = vector.shape_cast %13 : vector<1x32xf32> to vector<1x32xf32>
    %15 = vector.broadcast %14 : vector<1x32xf32> to vector<8x32xf32>
    %c0_14 = arith.constant 0 : index
    %c0_15 = arith.constant 0 : index
    %16 = vector.load %arg10[%c0_14, %c0_15] : memref<8x32xf32, #tpu.memory_space<vmem>>, vector<8x32xf32>
    %c0_16 = arith.constant 0 : index
    %c0_17 = arith.constant 0 : index
    %c0_18 = arith.constant 0 : index
    %17 = vector.load %arg11[%c0_16, %c0_17, %c0_18] : memref<4x8x96xf32, #tpu.memory_space<vmem>>, vector<1x8x96xf32>
    %18 = vector.shape_cast %17 : vector<1x8x96xf32> to vector<8x96xf32>
    %19 = arith.truncf %16 : vector<8x32xf32> to vector<8x32xbf16>
    %cst_19 = arith.constant dense<0.000000e+00> : vector<8x96xf32>
    %20 = tpu.matmul %19, %12, %cst_19 {dimension_numbers = #tpu.dot_dimension_numbers<[1], [0], [0], [1], [0, 0, 1, 1], [], []>} : vector<8x32xbf16>, vector<32x96xbf16>, vector<8x96xf32> -> vector<8x96xf32>
    %21 = vector.extract_strided_slice %18 {offsets = [0, 0], sizes = [8, 64], strides = [1, 1]} : vector<8x96xf32> to vector<8x64xf32>
    %22 = vector.extract_strided_slice %20 {offsets = [0, 0], sizes = [8, 64], strides = [1, 1]} : vector<8x96xf32> to vector<8x64xf32>
    %23 = arith.addf %21, %22 : vector<8x64xf32>
    %24 = arith.negf %23 : vector<8x64xf32>
    %25 = math.exp %24 : vector<8x64xf32>
    %cst_20 = arith.constant 1.000000e+00 : f32
    %26 = vector.broadcast %cst_20 : f32 to vector<8x64xf32>
    %27 = arith.addf %26, %25 : vector<8x64xf32>
    %28 = arith.divf %26, %27 : vector<8x64xf32>
    %29 = vector.extract_strided_slice %28 {offsets = [0, 0], sizes = [8, 32], strides = [1, 1]} : vector<8x64xf32> to vector<8x32xf32>
    %30 = vector.extract_strided_slice %28 {offsets = [0, 32], sizes = [8, 32], strides = [1, 1]} : vector<8x64xf32> to vector<8x32xf32>
    %31 = vector.extract_strided_slice %18 {offsets = [0, 64], sizes = [8, 32], strides = [1, 1]} : vector<8x96xf32> to vector<8x32xf32>
    %32 = vector.extract_strided_slice %20 {offsets = [0, 64], sizes = [8, 32], strides = [1, 1]} : vector<8x96xf32> to vector<8x32xf32>
    %33 = arith.addf %32, %15 : vector<8x32xf32>
    %34 = arith.mulf %29, %33 : vector<8x32xf32>
    %35 = arith.addf %31, %34 : vector<8x32xf32>
    %36 = math.tanh %35 : vector<8x32xf32>
    %37 = arith.subf %16, %36 : vector<8x32xf32>
    %38 = arith.mulf %30, %37 : vector<8x32xf32>
    %39 = arith.addf %36, %38 : vector<8x32xf32>
    %c1 = arith.constant 1 : index
    %c0_21 = arith.constant 0 : index
    %c0_22 = arith.constant 0 : index
    %40 = vector.load %arg11[%c1, %c0_21, %c0_22] : memref<4x8x96xf32, #tpu.memory_space<vmem>>, vector<1x8x96xf32>
    %41 = vector.shape_cast %40 : vector<1x8x96xf32> to vector<8x96xf32>
    %42 = arith.truncf %39 : vector<8x32xf32> to vector<8x32xbf16>
    %cst_23 = arith.constant dense<0.000000e+00> : vector<8x96xf32>
    %43 = tpu.matmul %42, %12, %cst_23 {dimension_numbers = #tpu.dot_dimension_numbers<[1], [0], [0], [1], [0, 0, 1, 1], [], []>} : vector<8x32xbf16>, vector<32x96xbf16>, vector<8x96xf32> -> vector<8x96xf32>
    %44 = vector.extract_strided_slice %41 {offsets = [0, 0], sizes = [8, 64], strides = [1, 1]} : vector<8x96xf32> to vector<8x64xf32>
    %45 = vector.extract_strided_slice %43 {offsets = [0, 0], sizes = [8, 64], strides = [1, 1]} : vector<8x96xf32> to vector<8x64xf32>
    %46 = arith.addf %44, %45 : vector<8x64xf32>
    %47 = arith.negf %46 : vector<8x64xf32>
    %48 = math.exp %47 : vector<8x64xf32>
    %cst_24 = arith.constant 1.000000e+00 : f32
    %49 = vector.broadcast %cst_24 : f32 to vector<8x64xf32>
    %50 = arith.addf %49, %48 : vector<8x64xf32>
    %51 = arith.divf %49, %50 : vector<8x64xf32>
    %52 = vector.extract_strided_slice %51 {offsets = [0, 0], sizes = [8, 32], strides = [1, 1]} : vector<8x64xf32> to vector<8x32xf32>
    %53 = vector.extract_strided_slice %51 {offsets = [0, 32], sizes = [8, 32], strides = [1, 1]} : vector<8x64xf32> to vector<8x32xf32>
    %54 = vector.extract_strided_slice %41 {offsets = [0, 64], sizes = [8, 32], strides = [1, 1]} : vector<8x96xf32> to vector<8x32xf32>
    %55 = vector.extract_strided_slice %43 {offsets = [0, 64], sizes = [8, 32], strides = [1, 1]} : vector<8x96xf32> to vector<8x32xf32>
    %56 = arith.addf %55, %15 : vector<8x32xf32>
    %57 = arith.mulf %52, %56 : vector<8x32xf32>
    %58 = arith.addf %54, %57 : vector<8x32xf32>
    %59 = math.tanh %58 : vector<8x32xf32>
    %60 = arith.subf %39, %59 : vector<8x32xf32>
    %61 = arith.mulf %53, %60 : vector<8x32xf32>
    %62 = arith.addf %59, %61 : vector<8x32xf32>
    %c2 = arith.constant 2 : index
    %c0_25 = arith.constant 0 : index
    %c0_26 = arith.constant 0 : index
    %63 = vector.load %arg11[%c2, %c0_25, %c0_26] : memref<4x8x96xf32, #tpu.memory_space<vmem>>, vector<1x8x96xf32>
    %64 = vector.shape_cast %63 : vector<1x8x96xf32> to vector<8x96xf32>
    %65 = arith.truncf %62 : vector<8x32xf32> to vector<8x32xbf16>
    %cst_27 = arith.constant dense<0.000000e+00> : vector<8x96xf32>
    %66 = tpu.matmul %65, %12, %cst_27 {dimension_numbers = #tpu.dot_dimension_numbers<[1], [0], [0], [1], [0, 0, 1, 1], [], []>} : vector<8x32xbf16>, vector<32x96xbf16>, vector<8x96xf32> -> vector<8x96xf32>
    %67 = vector.extract_strided_slice %64 {offsets = [0, 0], sizes = [8, 64], strides = [1, 1]} : vector<8x96xf32> to vector<8x64xf32>
    %68 = vector.extract_strided_slice %66 {offsets = [0, 0], sizes = [8, 64], strides = [1, 1]} : vector<8x96xf32> to vector<8x64xf32>
    %69 = arith.addf %67, %68 : vector<8x64xf32>
    %70 = arith.negf %69 : vector<8x64xf32>
    %71 = math.exp %70 : vector<8x64xf32>
    %cst_28 = arith.constant 1.000000e+00 : f32
    %72 = vector.broadcast %cst_28 : f32 to vector<8x64xf32>
    %73 = arith.addf %72, %71 : vector<8x64xf32>
    %74 = arith.divf %72, %73 : vector<8x64xf32>
    %75 = vector.extract_strided_slice %74 {offsets = [0, 0], sizes = [8, 32], strides = [1, 1]} : vector<8x64xf32> to vector<8x32xf32>
    %76 = vector.extract_strided_slice %74 {offsets = [0, 32], sizes = [8, 32], strides = [1, 1]} : vector<8x64xf32> to vector<8x32xf32>
    %77 = vector.extract_strided_slice %64 {offsets = [0, 64], sizes = [8, 32], strides = [1, 1]} : vector<8x96xf32> to vector<8x32xf32>
    %78 = vector.extract_strided_slice %66 {offsets = [0, 64], sizes = [8, 32], strides = [1, 1]} : vector<8x96xf32> to vector<8x32xf32>
    %79 = arith.addf %78, %15 : vector<8x32xf32>
    %80 = arith.mulf %75, %79 : vector<8x32xf32>
    %81 = arith.addf %77, %80 : vector<8x32xf32>
    %82 = math.tanh %81 : vector<8x32xf32>
    %83 = arith.subf %62, %82 : vector<8x32xf32>
    %84 = arith.mulf %76, %83 : vector<8x32xf32>
    %85 = arith.addf %82, %84 : vector<8x32xf32>
    %c3 = arith.constant 3 : index
    %c0_29 = arith.constant 0 : index
    %c0_30 = arith.constant 0 : index
    %86 = vector.load %arg11[%c3, %c0_29, %c0_30] : memref<4x8x96xf32, #tpu.memory_space<vmem>>, vector<1x8x96xf32>
    %87 = vector.shape_cast %86 : vector<1x8x96xf32> to vector<8x96xf32>
    %88 = arith.truncf %85 : vector<8x32xf32> to vector<8x32xbf16>
    %cst_31 = arith.constant dense<0.000000e+00> : vector<8x96xf32>
    %89 = tpu.matmul %88, %12, %cst_31 {dimension_numbers = #tpu.dot_dimension_numbers<[1], [0], [0], [1], [0, 0, 1, 1], [], []>} : vector<8x32xbf16>, vector<32x96xbf16>, vector<8x96xf32> -> vector<8x96xf32>
    %90 = vector.extract_strided_slice %87 {offsets = [0, 0], sizes = [8, 64], strides = [1, 1]} : vector<8x96xf32> to vector<8x64xf32>
    %91 = vector.extract_strided_slice %89 {offsets = [0, 0], sizes = [8, 64], strides = [1, 1]} : vector<8x96xf32> to vector<8x64xf32>
    %92 = arith.addf %90, %91 : vector<8x64xf32>
    %93 = arith.negf %92 : vector<8x64xf32>
    %94 = math.exp %93 : vector<8x64xf32>
    %cst_32 = arith.constant 1.000000e+00 : f32
    %95 = vector.broadcast %cst_32 : f32 to vector<8x64xf32>
    %96 = arith.addf %95, %94 : vector<8x64xf32>
    %97 = arith.divf %95, %96 : vector<8x64xf32>
    %98 = vector.extract_strided_slice %97 {offsets = [0, 0], sizes = [8, 32], strides = [1, 1]} : vector<8x64xf32> to vector<8x32xf32>
    %99 = vector.extract_strided_slice %97 {offsets = [0, 32], sizes = [8, 32], strides = [1, 1]} : vector<8x64xf32> to vector<8x32xf32>
    %100 = vector.extract_strided_slice %87 {offsets = [0, 64], sizes = [8, 32], strides = [1, 1]} : vector<8x96xf32> to vector<8x32xf32>
    %101 = vector.extract_strided_slice %89 {offsets = [0, 64], sizes = [8, 32], strides = [1, 1]} : vector<8x96xf32> to vector<8x32xf32>
    %102 = arith.addf %101, %15 : vector<8x32xf32>
    %103 = arith.mulf %98, %102 : vector<8x32xf32>
    %104 = arith.addf %100, %103 : vector<8x32xf32>
    %105 = math.tanh %104 : vector<8x32xf32>
    %106 = arith.subf %85, %105 : vector<8x32xf32>
    %107 = arith.mulf %99, %106 : vector<8x32xf32>
    %108 = arith.addf %105, %107 : vector<8x32xf32>
    %c0_33 = arith.constant 0 : index
    %c0_34 = arith.constant 0 : index
    %109 = vector.load %arg10[%c0_33, %c0_34] : memref<8x32xf32, #tpu.memory_space<vmem>>, vector<8x32xf32>
    tpu.vector_store %arg10[%c0_33, %c0_34], %108 {strides = array<i32>} : memref<8x32xf32, #tpu.memory_space<vmem>>, vector<8x32xf32>,
    %c1_i32 = arith.constant 1 : i32
    %110 = arith.cmpi eq, %arg1, %c1_i32 : i32
    %111 = arith.extui %110 : i1 to i32
    %c0_i32_35 = arith.constant 0 : i32
    %112 = arith.cmpi ne, %111, %c0_i32_35 : i32
    scf.if %112 {
      %c0_36 = arith.constant 0 : index
      %c0_37 = arith.constant 0 : index
      %113 = vector.load %arg10[%c0_36, %c0_37] : memref<8x32xf32, #tpu.memory_space<vmem>>, vector<8x32xf32>
      %114 = arith.truncf %113 : vector<8x32xf32> to vector<8x32xbf16>
      %c0_38 = arith.constant 0 : index
      %c0_39 = arith.constant 0 : index
      %115 = vector.load %arg7[%c0_38, %c0_39] : memref<32x4xbf16, #tpu.memory_space<vmem>>, vector<32x4xbf16>
      %cst_40 = arith.constant dense<0.000000e+00> : vector<8x4xf32>
      %116 = tpu.matmul %114, %115, %cst_40 {dimension_numbers = #tpu.dot_dimension_numbers<[1], [0], [0], [1], [0, 0, 1, 1], [], []>} : vector<8x32xbf16>, vector<32x4xbf16>, vector<8x4xf32> -> vector<8x4xf32>
      %c0_41 = arith.constant 0 : index
      %c0_42 = arith.constant 0 : index
      %117 = vector.load %arg8[%c0_41, %c0_42] : memref<1x4xf32, #tpu.memory_space<vmem>>, vector<1x4xf32>
      %118 = vector.broadcast %117 : vector<1x4xf32> to vector<8x4xf32>
      %119 = arith.addf %116, %118 : vector<8x4xf32>
      %120 = arith.negf %119 : vector<8x4xf32>
      %121 = math.exp %120 : vector<8x4xf32>
      %cst_43 = arith.constant 1.000000e+00 : f32
      %122 = vector.broadcast %cst_43 : f32 to vector<8x4xf32>
      %123 = arith.addf %122, %121 : vector<8x4xf32>
      %124 = arith.divf %122, %123 : vector<8x4xf32>
      %c0_44 = arith.constant 0 : index
      %c0_45 = arith.constant 0 : index
      %125 = vector.load %arg9[%c0_44, %c0_45] : memref<8x4xf32, #tpu.memory_space<vmem>>, vector<8x4xf32>
      tpu.vector_store %arg9[%c0_44, %c0_45], %124 {strides = array<i32>} : memref<8x4xf32, #tpu.memory_space<vmem>>, vector<8x4xf32>,
    } else {
    }
    return
  }
  func.func @transform_0(%arg0: i32, %arg1: i32) -> (i32, i32, i32) {
    %c0_i32 = arith.constant 0 : i32
    %c0_i32_0 = arith.constant 0 : i32
    return %arg1, %arg0, %c0_i32 : i32, i32, i32
  }
  func.func @transform_1(%arg0: i32, %arg1: i32) -> (i32, i32) {
    %c0_i32 = arith.constant 0 : i32
    %c0_i32_0 = arith.constant 0 : i32
    %c0_i32_1 = arith.constant 0 : i32
    return %c0_i32, %c0_i32_0 : i32, i32
  }
  func.func @transform_2(%arg0: i32, %arg1: i32) -> (i32, i32) {
    %c0_i32 = arith.constant 0 : i32
    %c0_i32_0 = arith.constant 0 : i32
    %c0_i32_1 = arith.constant 0 : i32
    return %c0_i32, %c0_i32_0 : i32, i32
  }
  func.func @transform_3(%arg0: i32, %arg1: i32) -> (i32, i32) {
    %c0_i32 = arith.constant 0 : i32
    %c0_i32_0 = arith.constant 0 : i32
    %c0_i32_1 = arith.constant 0 : i32
    return %c0_i32, %c0_i32_0 : i32, i32
  }
  func.func @transform_4(%arg0: i32, %arg1: i32) -> (i32, i32) {
    %c0_i32 = arith.constant 0 : i32
    %c0_i32_0 = arith.constant 0 : i32
    %c0_i32_1 = arith.constant 0 : i32
    return %c0_i32, %c0_i32_0 : i32, i32
  }
  func.func @transform_5(%arg0: i32, %arg1: i32) -> (i32, i32) {
    %c0_i32 = arith.constant 0 : i32
    %c0_i32_0 = arith.constant 0 : i32
    %c0_i32_1 = arith.constant 0 : i32
    return %c0_i32, %c0_i32_0 : i32, i32
  }
  func.func @transform_6(%arg0: i32, %arg1: i32) -> (i32, i32) {
    %c0_i32 = arith.constant 0 : i32
    %c0_i32_0 = arith.constant 0 : i32
    %c0_i32_1 = arith.constant 0 : i32
    return %c0_i32, %c0_i32_0 : i32, i32
  }
  func.func @transform_7(%arg0: i32, %arg1: i32) -> (i32, i32) {
    %c0_i32 = arith.constant 0 : i32
    %c0_i32_0 = arith.constant 0 : i32
    return %arg0, %c0_i32 : i32, i32
  }
}

</mosaic_0001>

<llo_original>
// kernel: tpu_custom_call.1
$region0: #{tpu_custom_call.1}
  #allocation0 [shape = 'u32[]', space=smem, size = 0x4, offset = 0x4, fixed_abs, tag = 'smem constant byte address 0x4 - core index']
  #allocation1 [shape = 'u32[144,128]{1,0:T(1,128)}', space=vmem, size = 0x12000, scoped, tag = 'internal scratch']
  #allocation2 [shape = 'f32[8,32]{1,0:T(8,128)}', space=vmem, size = 0x1000, scoped, tag = 'scratch operand']
  #allocation3 [shape = 'f32[4,8,96]{2,1,0:T(8,128)}', space=vmem, size = 0x4000, scoped, tag = 'scratch operand']
  %s0 = inlined_call_operand.hbm [shape: bf16[8,8,32], index: 0, kind: input, shape index: {}]
  %s1 = inlined_call_operand.vmem [shape: bf16[32,96], index: 1, kind: input, shape index: {}]
  %s2 = inlined_call_operand.hbm [shape: bf16[32,96], index: 2, kind: input, shape index: {}]
  %s3 = inlined_call_operand.vmem [shape: f32[1,96], index: 3, kind: input, shape index: {}]
  %s4 = inlined_call_operand.vmem [shape: f32[1,32], index: 4, kind: input, shape index: {}]
  %s5 = inlined_call_operand.vmem [shape: bf16[32,4], index: 5, kind: input, shape index: {}]
  %s6 = inlined_call_operand.vmem [shape: f32[1,4], index: 6, kind: input, shape index: {}]
  %s7 = inlined_call_operand.vmem [shape: f32[8,4], index: 7, kind: output, shape index: {}]
  %s8 = sld [smem:[#allocation0]]
  $region77: #{tpu_custom_call.1} parent=0
    _
  %s10 = ssub.s32 1, %s8
  %s11 = scalar_select 0, %s10, %s8
  $region1: #{tpu_custom_call.1} parent=0
    #allocation4 [shape = 'u8[16384]{0}', space=vmem, size = 0x4000, scoped, tag = 'input window, operand 0']
    #allocation5 [shape = 's32[2]{0}', space=sflag, size = 0x8, scoped, tag = 'scoped memory for tpu_custom_call.1']
    #allocation6 [shape = 'u8[8192]{0}', space=vmem, size = 0x2000, scoped, tag = 'input window, operand 2, single buffered']
    #allocation7 [shape = 's32[1]{0}', space=sflag, size = 0x4, scoped, tag = 'scoped memory for tpu_custom_call.1']
    %12 = vsyncpa [#allocation5], 0
    %s13 = scalar_lea.sflag [#allocation5], 1
    %14 = vsyncpa %s13, 0
    %15 = vsyncpa [#allocation7], 0
    loop: start=0, step=1, limit=4
    $region2: #{tpu_custom_call.1} parent=1 // loop_pre_header
      _
    $region3: #{tpu_custom_call.1} parent=1 // loop_header
      %s17 = sphi 0, %s21
      %p18 = scmp.ge.s32.totalorder %s17, 4
      %s24 = sphi 0, %s36
      %s25 = sphi 0, %s32
      %s26 = sphi 0, %s24
      %s27 = sphi 0, %s25
      %s28 = sphi 0, %s26
      %s29 = sphi 0, %s27
      %s41 = sphi 0, %s43
      %s44 = sphi 0, %s41
      %s45 = sphi 0, %s44
      %s61 = sphi 0, %s45
      %s65 = sphi 0, %s65
      %s67 = sphi 0, %s65
      %s68 = sphi 0, %s67
      %s82 = sphi 0, %s68
      %s86 = sphi 0, %s86
      %s88 = sphi 0, %s86
      %s89 = sphi 0, %s88
      %s103 = sphi 0, %s89
      %s107 = sphi 0, %s107
      %s109 = sphi 0, %s107
      %s110 = sphi 0, %s109
      %s124 = sphi 0, %s110
      %s128 = sphi 0, %s128
      %s130 = sphi 0, %s128
      %s131 = sphi 0, %s130
      %s145 = sphi 0, %s131
      %s149 = sphi 0, %s149
      %s151 = sphi 0, %s149
      %s152 = sphi 0, %s151
      %s166 = sphi 0, %s152
      %s170 = sphi 0, %s170
      %s172 = sphi 0, %s170
      %s173 = sphi 0, %s172
      %s187 = sphi 0, %s173
      %s193 = sphi 0, %s195
      %s196 = sphi 0, %s193
      %s197 = sphi 0, %s196
      %s213 = sphi 0, %s197
    $region4: #{tpu_custom_call.1} parent=1 // loop_header_branch
      %20 = sbr.rel (%p18) target = $region8
    $region5: #{tpu_custom_call.1} parent=1 // loop_body
      %s22 = ssub.s32 %s17, 1
      %s23 = ssub.s32 %s17, 2
      %s30 = sadd.s32 1, %s25
      %p31 = scmp.ge.s32.totalorder %s30, 2
      %s32 = scalar_select %p31, 0, %s30
      %s33 = sadd.s32 1, %s24
      %s34 = scalar_select %p31, %s33, %s24
      %p35 = scmp.ge.s32.totalorder %s34, 1
      %s36 = scalar_select %p35, 0, %s34
      %s37 = ssub.s32 %s25, %s32
      %s38 = ssub.s32 %s24, %s36
      %s39 = sor.u32 %s37, %s38
      %p40 = scmp.eq.s32.totalorder %s39, 0
      %s42 = sadd.s32 %s41, 1
      %s43 = scalar_select %p40, %s41, %s42
      %p46 = pneg %p40
      %p47 = scmp.eq.s32.totalorder %s17, 1
      %p48 = por %p46, %p47
      %p49 = scmp.ne.s32.totalorder %s41, %s44
      %p50 = scmp.eq.s32.totalorder %s17, 0
      %p51 = por %p49, %p50
      %p52 = scmp.ne.s32.totalorder %s41, %s44
      %p53 = scmp.eq.s32.totalorder %s22, 1
      %p54 = por %p52, %p53
      %p55 = scmp.ne.s32.totalorder %s44, %s45
      %p56 = scmp.eq.s32.totalorder %s22, 0
      %p57 = por %p55, %p56
      %p58 = scmp.ne.s32.totalorder %s44, %s45
      %p59 = scmp.eq.s32.totalorder %s23, 1
      %p60 = por %p58, %p59
      %p62 = scmp.ne.s32.totalorder %s45, %s61
      %p63 = scmp.eq.s32.totalorder %s23, 0
      %p64 = por %p62, %p63
      %s66 = sadd.s32 %s65, 1
      %p69 = scmp.eq.s32.totalorder %s17, 1
      %p70 = scmp.ne.s32.totalorder %s65, %s67
      %p71 = scmp.eq.s32.totalorder %s17, 0
      %p72 = por %p70, %p71
      %p73 = scmp.ne.s32.totalorder %s65, %s67
      %p74 = scmp.eq.s32.totalorder %s22, 1
      %p75 = por %p73, %p74
      %p76 = scmp.ne.s32.totalorder %s67, %s68
      %p77 = scmp.eq.s32.totalorder %s22, 0
      %p78 = por %p76, %p77
      %p79 = scmp.ne.s32.totalorder %s67, %s68
      %p80 = scmp.eq.s32.totalorder %s23, 1
      %p81 = por %p79, %p80
      %p83 = scmp.ne.s32.totalorder %s68, %s82
      %p84 = scmp.eq.s32.totalorder %s23, 0
      %p85 = por %p83, %p84
      %s87 = sadd.s32 %s86, 1
      %p90 = scmp.eq.s32.totalorder %s17, 1
      %p91 = scmp.ne.s32.totalorder %s86, %s88
      %p92 = scmp.eq.s32.totalorder %s17, 0
      %p93 = por %p91, %p92
      %p94 = scmp.ne.s32.totalorder %s86, %s88
      %p95 = scmp.eq.s32.totalorder %s22, 1
      %p96 = por %p94, %p95
      %p97 = scmp.ne.s32.totalorder %s88, %s89
      %p98 = scmp.eq.s32.totalorder %s22, 0
      %p99 = por %p97, %p98
      %p100 = scmp.ne.s32.totalorder %s88, %s89
      %p101 = scmp.eq.s32.totalorder %s23, 1
      %p102 = por %p100, %p101
      %p104 = scmp.ne.s32.totalorder %s89, %s103
      %p105 = scmp.eq.s32.totalorder %s23, 0
      %p106 = por %p104, %p105
      %s108 = sadd.s32 %s107, 1
      %p111 = scmp.eq.s32.totalorder %s17, 1
      %p112 = scmp.ne.s32.totalorder %s107, %s109
      %p113 = scmp.eq.s32.totalorder %s17, 0
      %p114 = por %p112, %p113
      %p115 = scmp.ne.s32.totalorder %s107, %s109
      %p116 = scmp.eq.s32.totalorder %s22, 1
      %p117 = por %p115, %p116
      %p118 = scmp.ne.s32.totalorder %s109, %s110
      %p119 = scmp.eq.s32.totalorder %s22, 0
      %p120 = por %p118, %p119
      %p121 = scmp.ne.s32.totalorder %s109, %s110
      %p122 = scmp.eq.s32.totalorder %s23, 1
      %p123 = por %p121, %p122
      %p125 = scmp.ne.s32.totalorder %s110, %s124
      %p126 = scmp.eq.s32.totalorder %s23, 0
      %p127 = por %p125, %p126
      %s129 = sadd.s32 %s128, 1
      %p132 = scmp.eq.s32.totalorder %s17, 1
      %p133 = scmp.ne.s32.totalorder %s128, %s130
      %p134 = scmp.eq.s32.totalorder %s17, 0
      %p135 = por %p133, %p134
      %p136 = scmp.ne.s32.totalorder %s128, %s130
      %p137 = scmp.eq.s32.totalorder %s22, 1
      %p138 = por %p136, %p137
      %p139 = scmp.ne.s32.totalorder %s130, %s131
      %p140 = scmp.eq.s32.totalorder %s22, 0
      %p141 = por %p139, %p140
      %p142 = scmp.ne.s32.totalorder %s130, %s131
      %p143 = scmp.eq.s32.totalorder %s23, 1
      %p144 = por %p142, %p143
      %p146 = scmp.ne.s32.totalorder %s131, %s145
      %p147 = scmp.eq.s32.totalorder %s23, 0
      %p148 = por %p146, %p147
      %s150 = sadd.s32 %s149, 1
      %p153 = scmp.eq.s32.totalorder %s17, 1
      %p154 = scmp.ne.s32.totalorder %s149, %s151
      %p155 = scmp.eq.s32.totalorder %s17, 0
      %p156 = por %p154, %p155
      %p157 = scmp.ne.s32.totalorder %s149, %s151
      %p158 = scmp.eq.s32.totalorder %s22, 1
      %p159 = por %p157, %p158
      %p160 = scmp.ne.s32.totalorder %s151, %s152
      %p161 = scmp.eq.s32.totalorder %s22, 0
      %p162 = por %p160, %p161
      %p163 = scmp.ne.s32.totalorder %s151, %s152
      %p164 = scmp.eq.s32.totalorder %s23, 1
      %p165 = por %p163, %p164
      %p167 = scmp.ne.s32.totalorder %s152, %s166
      %p168 = scmp.eq.s32.totalorder %s23, 0
      %p169 = por %p167, %p168
      %s171 = sadd.s32 %s170, 1
      %p174 = scmp.eq.s32.totalorder %s17, 1
      %p175 = scmp.ne.s32.totalorder %s170, %s172
      %p176 = scmp.eq.s32.totalorder %s17, 0
      %p177 = por %p175, %p176
      %p178 = scmp.ne.s32.totalorder %s170, %s172
      %p179 = scmp.eq.s32.totalorder %s22, 1
      %p180 = por %p178, %p179
      %p181 = scmp.ne.s32.totalorder %s172, %s173
      %p182 = scmp.eq.s32.totalorder %s22, 0
      %p183 = por %p181, %p182
      %p184 = scmp.ne.s32.totalorder %s172, %s173
      %p185 = scmp.eq.s32.totalorder %s23, 1
      %p186 = por %p184, %p185
      %p188 = scmp.ne.s32.totalorder %s173, %s187
      %p189 = scmp.eq.s32.totalorder %s23, 0
      %p190 = por %p188, %p189
      %s191 = ssub.s32 %s24, %s36
      %p192 = scmp.eq.s32.totalorder %s191, 0
      %s194 = sadd.s32 %s193, 1
      %s195 = scalar_select %p192, %s193, %s194
      %p198 = pneg %p192
      %p199 = scmp.eq.s32.totalorder %s17, 1
      %p200 = por %p198, %p199
      %p201 = scmp.ne.s32.totalorder %s193, %s196
      %p202 = scmp.eq.s32.totalorder %s17, 0
      %p203 = por %p201, %p202
      %p204 = scmp.ne.s32.totalorder %s193, %s196
      %p205 = scmp.eq.s32.totalorder %s22, 1
      %p206 = por %p204, %p205
      %p207 = scmp.ne.s32.totalorder %s196, %s197
      %p208 = scmp.eq.s32.totalorder %s22, 0
      %p209 = por %p207, %p208
      %p210 = scmp.ne.s32.totalorder %s196, %s197
      %p211 = scmp.eq.s32.totalorder %s23, 1
      %p212 = por %p210, %p211
      %p214 = scmp.ne.s32.totalorder %s197, %s213
      %p215 = scmp.eq.s32.totalorder %s23, 0
      %p216 = por %p214, %p215
      %p217 = scmp.le.s32.totalorder 1, %s17
      %p218 = scmp.lt.s32.totalorder %s17, 3
      %p219 = pnand %p217, %p218
      %p220 = pneg %p219
      // Predicated region
      $region9: #{tpu_custom_call.1} parent=5 // pred_check
        _
      $region10: #{tpu_custom_call.1} parent=5 // pred_check_branch
        %222 = sbr.rel (%p219) target = $region12
      $region11: #{tpu_custom_call.1} parent=5 // pred_region
        %s223 = ssub.s32 %s17, 1
        // Predicated region
        $region13: #{tpu_custom_call.1} parent=11 // pred_check
          %p224 = pneg %p78
        $region14: #{tpu_custom_call.1} parent=11 // pred_check_branch
          %226 = sbr.rel (%p224) target = $region16
        $region15: #{tpu_custom_call.1} parent=11 // pred_region
          _
        $region16: #{tpu_custom_call.1} parent=11 // pred_fallthru
          _
        // Predicated region
        $region17: #{tpu_custom_call.1} parent=11 // pred_check
          %p227 = pneg %p99
        $region18: #{tpu_custom_call.1} parent=11 // pred_check_branch
          %229 = sbr.rel (%p227) target = $region20
        $region19: #{tpu_custom_call.1} parent=11 // pred_region
          %s231 = ssub.s32 256, 256
          %232 = vsyncadd [#allocation7], %s231
          %s233 = sshll.u32 [#allocation6], 4
          %s234 = int_to_ptr.vmem [resolvable:$true] %s233
          %239 = dma.hbm_to_vmem [thread:$0]  %s2, 256, %s234, [#allocation7], 64, 64, 4
        $region20: #{tpu_custom_call.1} parent=11 // pred_fallthru
          _
        // Predicated region
        $region21: #{tpu_custom_call.1} parent=11 // pred_check
          %p240 = pneg %p120
        $region22: #{tpu_custom_call.1} parent=11 // pred_check_branch
          %242 = sbr.rel (%p240) target = $region24
        $region23: #{tpu_custom_call.1} parent=11 // pred_region
          _
        $region24: #{tpu_custom_call.1} parent=11 // pred_fallthru
          _
        // Predicated region
        $region25: #{tpu_custom_call.1} parent=11 // pred_check
          %p243 = pneg %p141
        $region26: #{tpu_custom_call.1} parent=11 // pred_check_branch
          %245 = sbr.rel (%p243) target = $region28
        $region27: #{tpu_custom_call.1} parent=11 // pred_region
          _
        $region28: #{tpu_custom_call.1} parent=11 // pred_fallthru
          _
        // Predicated region
        $region29: #{tpu_custom_call.1} parent=11 // pred_check
          %p246 = pneg %p162
        $region30: #{tpu_custom_call.1} parent=11 // pred_check_branch
          %248 = sbr.rel (%p246) target = $region32
        $region31: #{tpu_custom_call.1} parent=11 // pred_region
          _
        $region32: #{tpu_custom_call.1} parent=11 // pred_fallthru
          _
        // Predicated region
        $region33: #{tpu_custom_call.1} parent=11 // pred_check
          %p249 = pneg %p183
        $region34: #{tpu_custom_call.1} parent=11 // pred_check_branch
          %251 = sbr.rel (%p249) target = $region36
        $region35: #{tpu_custom_call.1} parent=11 // pred_region
          _
        $region36: #{tpu_custom_call.1} parent=11 // pred_fallthru
          _
      $region12: #{tpu_custom_call.1} parent=5 // pred_fallthru
        _
      %p252 = scmp.lt.s32.totalorder %s17, 2
      // Predicated region
      $region37: #{tpu_custom_call.1} parent=5 // pred_check
        %p253 = pneg %p252
      $region38: #{tpu_custom_call.1} parent=5 // pred_check_branch
        %255 = sbr.rel (%p253) target = $region40
      $region39: #{tpu_custom_call.1} parent=5 // pred_region
        // Predicated region
        $region41: #{tpu_custom_call.1} parent=39 // pred_check
          %p256 = pneg %p51
        $region42: #{tpu_custom_call.1} parent=39 // pred_check_branch
          %258 = sbr.rel (%p256) target = $region44
        $region43: #{tpu_custom_call.1} parent=39 // pred_region
          %s259 = sand.u32 %s41, 1
          %s260 = scalar_lea.sflag [#allocation5], %s259
          %s261 = sand.u32 %s41, 1
          %s262 = smul.addr %s261, 16
          %s263 = scalar_lea.vmem [#allocation4], %s262
          %s264 = smul.u32 4, %s25
          %s266 = ssub.s32 256, 256
          %267 = vsyncadd %s260, %s266
          %s268 = sadd.s32 %s24, %s264
          %s269 = smul.addr %s268, 64
          %s270 = scalar_lea.hbm %s0, %s269
          %s271 = sshll.u32 %s263, 4
          %s272 = int_to_ptr.vmem [resolvable:$true] %s271
          %277 = dma.hbm_to_vmem [thread:$0]  %s270, 256, %s272, %s260, 64, 64, 4
        $region44: #{tpu_custom_call.1} parent=39 // pred_fallthru
          _
      $region40: #{tpu_custom_call.1} parent=5 // pred_fallthru
        _
      %p278 = scmp.le.s32.totalorder 1, %s17
      %p279 = scmp.lt.s32.totalorder %s17, 3
      %p280 = pnand %p278, %p279
      %p281 = pneg %p280
      // Predicated region
      $region45: #{tpu_custom_call.1} parent=5 // pred_check
        _
      $region46: #{tpu_custom_call.1} parent=5 // pred_check_branch
        %283 = sbr.rel (%p280) target = $region48
      $region47: #{tpu_custom_call.1} parent=5 // pred_region
        %s284 = ssub.s32 %s17, 1
        %s285 = sand.u32 %s44, 1
        %s286 = scalar_lea.sflag [#allocation5], %s285
        %s287 = sand.u32 %s44, 1
        %s288 = smul.addr %s287, 16
        %s289 = scalar_lea.vmem [#allocation4], %s288
        // Predicated region
        $region49: #{tpu_custom_call.1} parent=47 // pred_check
          %p290 = pneg %p57
        $region50: #{tpu_custom_call.1} parent=47 // pred_check_branch
          %292 = sbr.rel (%p290) target = $region52
        $region51: #{tpu_custom_call.1} parent=47 // pred_region
          %293 = dma.done %s286, 256
        $region52: #{tpu_custom_call.1} parent=47 // pred_fallthru
          _
        // Predicated region
        $region53: #{tpu_custom_call.1} parent=47 // pred_check
          %p294 = pneg %p99
        $region54: #{tpu_custom_call.1} parent=47 // pred_check_branch
          %296 = sbr.rel (%p294) target = $region56
        $region55: #{tpu_custom_call.1} parent=47 // pred_region
          %297 = dma.done [#allocation7], 256
        $region56: #{tpu_custom_call.1} parent=47 // pred_fallthru
          _
        %s298 = sand.u32 %s44, 1
        %s299 = scalar_lea.sflag [#allocation5], %s298
        %s300 = sand.u32 %s44, 1
        %s301 = smul.addr %s300, 16
        %s302 = scalar_lea.vmem [#allocation4], %s301
        %p303 = pneg %p57
        %p304 = pneg %p54
        %p305 = pneg %p78
        %p306 = pneg %p75
        %p307 = pneg %p99
        %p308 = pneg %p96
        %p309 = pneg %p120
        %p310 = pneg %p117
        %p311 = pneg %p141
        %p312 = pneg %p138
        %p313 = pneg %p162
        %p314 = pneg %p159
        %p315 = pneg %p183
        %p316 = pneg %p180
        %p317 = pneg %p209
        %p318 = pneg %p206
        %p319 = scmp.lt.s32.totalorder %s26, 0
        %s320 = scalar_select %p319, %s26, 0
        %s321 = smul.addr %s320, 8
        %s322 = scalar_lea.vmem %s7, %s321
        %s323 = smul.u32 4, %s27
        %p324 = scmp.lt.s32.totalorder %s26, 0
        %s325 = scalar_select %p324, %s26, 0
        %s326 = smul.addr %s325, 8
        %s327 = scalar_lea.vmem %s7, %s326
        %p329 = scmp.eq.s32.totalorder %s27, 0
        // Predicated region
        $region57: #{tpu_custom_call.1} parent=47 // pred_check
          %p330 = pneg %p329
        $region58: #{tpu_custom_call.1} parent=47 // pred_check_branch
          %332 = sbr.rel (%p330) target = $region60
        $region59: #{tpu_custom_call.1} parent=47 // pred_region
          %vm333 = vcmask 261120
          %334 = vst.msk [vmem:[#allocation2] sm:$0xff] %vm333, 0.0
        $region60: #{tpu_custom_call.1} parent=47 // pred_fallthru
          _
        %v335 = vld [vmem:[%s289] sm:$0xf]
        %v336 = vld [vmem:[%s289 + $0x4] sm:$0xf]
        %v337 = vld [vmem:[%s289 + $0x8] sm:$0xf]
        %v338 = vld [vmem:[%s289 + $0xc] sm:$0xf]
        %v339 = vld [vmem:[%s1] sm:$0xf]
        %v340 = vld [vmem:[%s1 + $0x4] sm:$0xf]
        %v341 = vld [vmem:[%s1 + $0x8] sm:$0xf]
        %v342 = vld [vmem:[%s1 + $0xc] sm:$0xf]
        %v343 = vld [vmem:[%s3] sm:$0x1]
        %v345 = vlaneseq
        %v346 = vshrl.u32 %v345, 7
        %v347 = vsub.s32 0, %v346
        %v348 = vrot.slane %v343, %v347
        %v354 = vunpack.c.l.b16 %v335
        %v355 = vunpack.c.l.b16 %v336
        %v356 = vunpack.c.l.b16 %v337
        %v357 = vunpack.c.l.b16 %v338
        %v358 = vpack.c.b16 %v355, %v354
        %v359 = vpack.c.b16 %v357, %v356
        %v364 = vunpack.c.l.b16 %v339
        %v365 = vunpack.c.l.b16 %v340
        %v366 = vunpack.c.l.b16 %v341
        %v367 = vunpack.c.l.b16 %v342
        %v368 = vpack.c.b16 %v365, %v364
        %v369 = vpack.c.b16 %v367, %v366
        %vm372 = vcmask 261120
        %v374 = vsel %vm372, %v358, 0
        %v377 = vsel %vm372, %v359, 0
        %379 = vmatprep.subr.bf16.mxu0 0
        %380 = vmatpush1.bf16.msra.mxu0 0
        %381 = vmatprep.subr.bf16.mxu0 0
        %382 = vmatpush1.bf16.msra.mxu0 0
        %383 = vmatprep.subr.bf16.mxu0 0
        %384 = vmatpush1.bf16.msra.mxu0 0
        %385 = vmatprep.subr.bf16.mxu0 0
        %386 = vmatpush1.bf16.msra.mxu0 0
        %387 = vmatprep.subr.bf16.mxu0 0
        %388 = vmatpush1.bf16.msra.mxu0 0
        %389 = vmatprep.subr.bf16.mxu0 0
        %390 = vmatpush1.bf16.msra.mxu0 0
        %391 = vmatprep.subr.bf16.mxu0 0
        %392 = vmatpush1.bf16.msra.mxu0 %v369
        %393 = vmatprep.subr.bf16.mxu0 0
        %394 = vmatpush1.bf16.msra.mxu0 %v368
        %395 = vmatprep.subr.bf16.mxu0 0
        %396 = vmatpush2.bf16.msra.mxu0 0
        %397 = vmatprep.subr.bf16.mxu0 0
        %398 = vmatpush2.bf16.msra.mxu0 0
        %399 = vmatprep.subr.bf16.mxu0 0
        %400 = vmatpush2.bf16.msra.mxu0 0
        %401 = vmatprep.subr.bf16.mxu0 0
        %402 = vmatpush2.bf16.msra.mxu0 0
        %403 = vmatprep.subr.bf16.mxu0 0
        %404 = vmatpush2.bf16.msra.mxu0 0
        %405 = vmatprep.subr.bf16.mxu0 0
        %406 = vmatpush2.bf16.msra.mxu0 0
        %407 = vmatprep.subr.bf16.mxu0 0
        %408 = vmatpush2.bf16.msra.mxu0 0
        %409 = vmatprep.subr.bf16.mxu0 0
        %410 = vmatpush2.bf16.msra.mxu0 0
        %411 = vmatprep.mubr.bf16.mxu0 0
        %412 = vmatmul.mubr.bf16.gmra.mxu0 %v374
        %v413 = vpop.f32.mrf.mxu0
        %v414 = vadd.f32 %v348, %v413
        %v415 = vpop.f32.mrf.mxu0
        %v416 = vpop.f32.mrf.mxu0
        %v417 = vadd.f32 %v348, %v416
        %v418 = vpop.f32.mrf.mxu0
        %419 = vmatprep.mubr.bf16.mxu0 0
        %420 = vmatmul.mubr.bf16.gmra.mxu0 %v377
        %v421 = vpop.f32.mrf.mxu0
        %v422 = vadd.f32 %v348, %v421
        %v423 = vpop.f32.mrf.mxu0
        %v424 = vpop.f32.mrf.mxu0
        %v425 = vadd.f32 %v348, %v424
        %v426 = vpop.f32.mrf.mxu0
        %427 = vdwg.mxu0
        %vm428 = vcmask 785408
        %429 = vst.msk [vmem:[#allocation3] sm:$0xff] %vm428, %v414
        %430 = vst.msk [vmem:[#allocation3 + $0x8] sm:$0xff] %vm428, %v417
        %431 = vst.msk [vmem:[#allocation3 + $0x10] sm:$0xff] %vm428, %v422
        %432 = vst.msk [vmem:[#allocation3 + $0x18] sm:$0xff] %vm428, %v425
        %v433 = vld [vmem:[#allocation6] sm:$0xf]
        %v434 = vld [vmem:[#allocation6 + $0x4] sm:$0xf]
        %v435 = vld [vmem:[#allocation6 + $0x8] sm:$0xf]
        %v436 = vld [vmem:[#allocation6 + $0xc] sm:$0xf]
        %v437 = vld [vmem:[%s4] sm:$0x1]
        %v439 = vlaneseq
        %v440 = vshrl.u32 %v439, 7
        %v441 = vsub.s32 0, %v440
        %v442 = vrot.slane %v437, %v441
        %v443 = vld [vmem:[#allocation2] sm:$0xff]
        %v444 = vld [vmem:[#allocation3] sm:$0xff]
        %v445 = vpack.c.bf16 %v443, %v443
        %v450 = vunpack.c.l.b16 %v433
        %v451 = vunpack.c.l.b16 %v434
        %v452 = vunpack.c.l.b16 %v435
        %v453 = vunpack.c.l.b16 %v436
        %v454 = vpack.c.b16 %v451, %v450
        %v455 = vpack.c.b16 %v453, %v452
        %v459 = vsel %vm372, %v445, 0
        %461 = vmatprep.subr.bf16.mxu0 0
        %462 = vmatpush1.bf16.msra.mxu0 0
        %463 = vmatprep.subr.bf16.mxu0 0
        %464 = vmatpush1.bf16.msra.mxu0 0
        %465 = vmatprep.subr.bf16.mxu0 0
        %466 = vmatpush1.bf16.msra.mxu0 0
        %467 = vmatprep.subr.bf16.mxu0 0
        %468 = vmatpush1.bf16.msra.mxu0 0
        %469 = vmatprep.subr.bf16.mxu0 0
        %470 = vmatpush1.bf16.msra.mxu0 0
        %471 = vmatprep.subr.bf16.mxu0 0
        %472 = vmatpush1.bf16.msra.mxu0 0
        %473 = vmatprep.subr.bf16.mxu0 0
        %474 = vmatpush1.bf16.msra.mxu0 %v455
        %475 = vmatprep.subr.bf16.mxu0 0
        %476 = vmatpush1.bf16.msra.mxu0 %v454
        %477 = vmatprep.subr.bf16.mxu0 0
        %478 = vmatpush2.bf16.msra.mxu0 0
        %479 = vmatprep.subr.bf16.mxu0 0
        %480 = vmatpush2.bf16.msra.mxu0 0
        %481 = vmatprep.subr.bf16.mxu0 0
        %482 = vmatpush2.bf16.msra.mxu0 0
        %483 = vmatprep.subr.bf16.mxu0 0
        %484 = vmatpush2.bf16.msra.mxu0 0
        %485 = vmatprep.subr.bf16.mxu0 0
        %486 = vmatpush2.bf16.msra.mxu0 0
        %487 = vmatprep.subr.bf16.mxu0 0
        %488 = vmatpush2.bf16.msra.mxu0 0
        %489 = vmatprep.subr.bf16.mxu0 0
        %490 = vmatpush2.bf16.msra.mxu0 0
        %491 = vmatprep.subr.bf16.mxu0 0
        %492 = vmatpush2.bf16.msra.mxu0 0
        %493 = vmatprep.mubr.bf16.mxu0 0
        %494 = vmatmul.mubr.bf16.gmra.mxu0 %v459
        %v495 = vpop.f32.mrf.mxu0
        %v496 = vadd.f32 0.0, %v495
        %v497 = vpop.f32.mrf.mxu0
        %v498 = vpop.f32.mrf.mxu0
        %v499 = vpop.f32.mrf.mxu0
        %500 = vdwg.mxu0
        %v501 = vadd.f32 %v444, %v496
        %v502 = vxor.u32 %v501, 2147483648
        %v503 = vmul.f32 %v502, 1.442695
        %v504 = vpow.pop %v503
        %v505 = vadd.f32 %v504, 1.0
        %v506 = vrcp.pop %v505
        %v507 = vmul.f32 1.0, %v506
        %508 = vrot.lane.b32.xlu0 %v442, 64
        %v509 = vpop.permute.xlu0 %508
        %v511 = vadd.f32 %v496, %v509
        %513 = vrot.lane.b32.xlu0 %v511, 64
        %v514 = vpop.permute.xlu0 %513
        %v516 = vmul.f32 %v507, %v514
        %518 = vrot.lane.b32.xlu0 %v516, 64
        %v519 = vpop.permute.xlu0 %518
        %v521 = vadd.f32 %v444, %v519
        %v522 = vtanh.pop %v521
        %524 = vrot.lane.b32.xlu0 %v522, 64
        %v525 = vpop.permute.xlu0 %524
        %v527 = vsub.f32 %v443, %v525
        %529 = vrot.lane.b32.xlu0 %v527, 32
        %v530 = vpop.permute.xlu0 %529
        %v532 = vmul.f32 %v507, %v530
        %534 = vrot.lane.b32.xlu0 %v532, 32
        %v535 = vpop.permute.xlu0 %534
        %v537 = vadd.f32 %v522, %v535
        %s538 = scalar_lea.vmem [#allocation3], 8
        %v539 = vld [vmem:[%s538] sm:$0xff]
        %v540 = vpack.c.bf16 %v537, %v537
        %542 = vrot.lane.b32.xlu0 %v540, 64
        %v543 = vpop.permute.xlu0 %542
        %v545 = vsel %vm372, %v543, 0
        %547 = vmatprep.subr.bf16.mxu0 0
        %548 = vmatpush1.bf16.msra.mxu0 0
        %549 = vmatprep.subr.bf16.mxu0 0
        %550 = vmatpush1.bf16.msra.mxu0 0
        %551 = vmatprep.subr.bf16.mxu0 0
        %552 = vmatpush1.bf16.msra.mxu0 0
        %553 = vmatprep.subr.bf16.mxu0 0
        %554 = vmatpush1.bf16.msra.mxu0 0
        %555 = vmatprep.subr.bf16.mxu0 0
        %556 = vmatpush1.bf16.msra.mxu0 0
        %557 = vmatprep.subr.bf16.mxu0 0
        %558 = vmatpush1.bf16.msra.mxu0 0
        %559 = vmatprep.subr.bf16.mxu0 0
        %560 = vmatpush1.bf16.msra.mxu0 %v455
        %561 = vmatprep.subr.bf16.mxu0 0
        %562 = vmatpush1.bf16.msra.mxu0 %v454
        %563 = vmatprep.subr.bf16.mxu0 0
        %564 = vmatpush2.bf16.msra.mxu0 0
        %565 = vmatprep.subr.bf16.mxu0 0
        %566 = vmatpush2.bf16.msra.mxu0 0
        %567 = vmatprep.subr.bf16.mxu0 0
        %568 = vmatpush2.bf16.msra.mxu0 0
        %569 = vmatprep.subr.bf16.mxu0 0
        %570 = vmatpush2.bf16.msra.mxu0 0
        %571 = vmatprep.subr.bf16.mxu0 0
        %572 = vmatpush2.bf16.msra.mxu0 0
        %573 = vmatprep.subr.bf16.mxu0 0
        %574 = vmatpush2.bf16.msra.mxu0 0
        %575 = vmatprep.subr.bf16.mxu0 0
        %576 = vmatpush2.bf16.msra.mxu0 0
        %577 = vmatprep.subr.bf16.mxu0 0
        %578 = vmatpush2.bf16.msra.mxu0 0
        %579 = vmatprep.mubr.bf16.mxu0 0
        %580 = vmatmul.mubr.bf16.gmra.mxu0 %v545
        %v581 = vpop.f32.mrf.mxu0
        %v582 = vadd.f32 0.0, %v581
        %v583 = vpop.f32.mrf.mxu0
        %v584 = vpop.f32.mrf.mxu0
        %v585 = vpop.f32.mrf.mxu0
        %586 = vdwg.mxu0
        %v587 = vadd.f32 %v539, %v582
        %v588 = vxor.u32 %v587, 2147483648
        %v589 = vmul.f32 %v588, 1.442695
        %v590 = vpow.pop %v589
        %v591 = vadd.f32 %v590, 1.0
        %v592 = vrcp.pop %v591
        %v593 = vmul.f32 1.0, %v592
        %v594 = vadd.f32 %v582, %v509
        %596 = vrot.lane.b32.xlu0 %v594, 64
        %v597 = vpop.permute.xlu0 %596
        %v599 = vmul.f32 %v593, %v597
        %601 = vrot.lane.b32.xlu0 %v599, 64
        %v602 = vpop.permute.xlu0 %601
        %v604 = vadd.f32 %v539, %v602
        %v605 = vtanh.pop %v604
        %v606 = vsub.f32 %v537, %v605
        %608 = vrot.lane.b32.xlu0 %v606, 96
        %v609 = vpop.permute.xlu0 %608
        %v611 = vmul.f32 %v593, %v609
        %613 = vrot.lane.b32.xlu0 %v611, 32
        %v614 = vpop.permute.xlu0 %613
        %v616 = vadd.f32 %v605, %v614
        %s617 = scalar_lea.vmem [#allocation3], 16
        %v618 = vld [vmem:[%s617] sm:$0xff]
        %v619 = vpack.c.bf16 %v616, %v616
        %621 = vrot.lane.b32.xlu0 %v619, 64
        %v622 = vpop.permute.xlu0 %621
        %v624 = vsel %vm372, %v622, 0
        %626 = vmatprep.subr.bf16.mxu0 0
        %627 = vmatpush1.bf16.msra.mxu0 0
        %628 = vmatprep.subr.bf16.mxu0 0
        %629 = vmatpush1.bf16.msra.mxu0 0
        %630 = vmatprep.subr.bf16.mxu0 0
        %631 = vmatpush1.bf16.msra.mxu0 0
        %632 = vmatprep.subr.bf16.mxu0 0
        %633 = vmatpush1.bf16.msra.mxu0 0
        %634 = vmatprep.subr.bf16.mxu0 0
        %635 = vmatpush1.bf16.msra.mxu0 0
        %636 = vmatprep.subr.bf16.mxu0 0
        %637 = vmatpush1.bf16.msra.mxu0 0
        %638 = vmatprep.subr.bf16.mxu0 0
        %639 = vmatpush1.bf16.msra.mxu0 %v455
        %640 = vmatprep.subr.bf16.mxu0 0
        %641 = vmatpush1.bf16.msra.mxu0 %v454
        %642 = vmatprep.subr.bf16.mxu0 0
        %643 = vmatpush2.bf16.msra.mxu0 0
        %644 = vmatprep.subr.bf16.mxu0 0
        %645 = vmatpush2.bf16.msra.mxu0 0
        %646 = vmatprep.subr.bf16.mxu0 0
        %647 = vmatpush2.bf16.msra.mxu0 0
        %648 = vmatprep.subr.bf16.mxu0 0
        %649 = vmatpush2.bf16.msra.mxu0 0
        %650 = vmatprep.subr.bf16.mxu0 0
        %651 = vmatpush2.bf16.msra.mxu0 0
        %652 = vmatprep.subr.bf16.mxu0 0
        %653 = vmatpush2.bf16.msra.mxu0 0
        %654 = vmatprep.subr.bf16.mxu0 0
        %655 = vmatpush2.bf16.msra.mxu0 0
        %656 = vmatprep.subr.bf16.mxu0 0
        %657 = vmatpush2.bf16.msra.mxu0 0
        %658 = vmatprep.mubr.bf16.mxu0 0
        %659 = vmatmul.mubr.bf16.gmra.mxu0 %v624
        %v660 = vpop.f32.mrf.mxu0
        %v661 = vadd.f32 0.0, %v660
        %v662 = vpop.f32.mrf.mxu0
        %v663 = vpop.f32.mrf.mxu0
        %v664 = vpop.f32.mrf.mxu0
        %665 = vdwg.mxu0
        %v666 = vadd.f32 %v618, %v661
        %v667 = vxor.u32 %v666, 2147483648
        %v668 = vmul.f32 %v667, 1.442695
        %v669 = vpow.pop %v668
        %v670 = vadd.f32 %v669, 1.0
        %v671 = vrcp.pop %v670
        %v672 = vmul.f32 1.0, %v671
        %v673 = vadd.f32 %v661, %v509
        %675 = vrot.lane.b32.xlu0 %v673, 64
        %v676 = vpop.permute.xlu0 %675
        %v678 = vmul.f32 %v672, %v676
        %680 = vrot.lane.b32.xlu0 %v678, 64
        %v681 = vpop.permute.xlu0 %680
        %v683 = vadd.f32 %v618, %v681
        %v684 = vtanh.pop %v683
        %v685 = vsub.f32 %v616, %v684
        %687 = vrot.lane.b32.xlu0 %v685, 96
        %v688 = vpop.permute.xlu0 %687
        %v690 = vmul.f32 %v672, %v688
        %692 = vrot.lane.b32.xlu0 %v690, 32
        %v693 = vpop.permute.xlu0 %692
        %v695 = vadd.f32 %v684, %v693
        %s696 = scalar_lea.vmem [#allocation3], 24
        %v697 = vld [vmem:[%s696] sm:$0xff]
        %v698 = vpack.c.bf16 %v695, %v695
        %700 = vrot.lane.b32.xlu0 %v698, 64
        %v701 = vpop.permute.xlu0 %700
        %v703 = vsel %vm372, %v701, 0
        %705 = vmatprep.subr.bf16.mxu0 0
        %706 = vmatpush1.bf16.msra.mxu0 0
        %707 = vmatprep.subr.bf16.mxu0 0
        %708 = vmatpush1.bf16.msra.mxu0 0
        %709 = vmatprep.subr.bf16.mxu0 0
        %710 = vmatpush1.bf16.msra.mxu0 0
        %711 = vmatprep.subr.bf16.mxu0 0
        %712 = vmatpush1.bf16.msra.mxu0 0
        %713 = vmatprep.subr.bf16.mxu0 0
        %714 = vmatpush1.bf16.msra.mxu0 0
        %715 = vmatprep.subr.bf16.mxu0 0
        %716 = vmatpush1.bf16.msra.mxu0 0
        %717 = vmatprep.subr.bf16.mxu0 0
        %718 = vmatpush1.bf16.msra.mxu0 %v455
        %719 = vmatprep.subr.bf16.mxu0 0
        %720 = vmatpush1.bf16.msra.mxu0 %v454
        %721 = vmatprep.subr.bf16.mxu0 0
        %722 = vmatpush2.bf16.msra.mxu0 0
        %723 = vmatprep.subr.bf16.mxu0 0
        %724 = vmatpush2.bf16.msra.mxu0 0
        %725 = vmatprep.subr.bf16.mxu0 0
        %726 = vmatpush2.bf16.msra.mxu0 0
        %727 = vmatprep.subr.bf16.mxu0 0
        %728 = vmatpush2.bf16.msra.mxu0 0
        %729 = vmatprep.subr.bf16.mxu0 0
        %730 = vmatpush2.bf16.msra.mxu0 0
        %731 = vmatprep.subr.bf16.mxu0 0
        %732 = vmatpush2.bf16.msra.mxu0 0
        %733 = vmatprep.subr.bf16.mxu0 0
        %734 = vmatpush2.bf16.msra.mxu0 0
        %735 = vmatprep.subr.bf16.mxu0 0
        %736 = vmatpush2.bf16.msra.mxu0 0
        %737 = vmatprep.mubr.bf16.mxu0 0
        %738 = vmatmul.mubr.bf16.gmra.mxu0 %v703
        %v739 = vpop.f32.mrf.mxu0
        %v740 = vadd.f32 0.0, %v739
        %v741 = vpop.f32.mrf.mxu0
        %v742 = vpop.f32.mrf.mxu0
        %v743 = vpop.f32.mrf.mxu0
        %744 = vdwg.mxu0
        %v745 = vadd.f32 %v697, %v740
        %v746 = vxor.u32 %v745, 2147483648
        %v747 = vmul.f32 %v746, 1.442695
        %v748 = vpow.pop %v747
        %v749 = vadd.f32 %v748, 1.0
        %v750 = vrcp.pop %v749
        %v751 = vmul.f32 1.0, %v750
        %v752 = vadd.f32 %v740, %v509
        %754 = vrot.lane.b32.xlu0 %v752, 64
        %v755 = vpop.permute.xlu0 %754
        %v757 = vmul.f32 %v751, %v755
        %759 = vrot.lane.b32.xlu0 %v757, 64
        %v760 = vpop.permute.xlu0 %759
        %v762 = vadd.f32 %v697, %v760
        %v763 = vtanh.pop %v762
        %v764 = vsub.f32 %v695, %v763
        %766 = vrot.lane.b32.xlu0 %v764, 96
        %v767 = vpop.permute.xlu0 %766
        %v769 = vmul.f32 %v751, %v767
        %771 = vrot.lane.b32.xlu0 %v769, 32
        %v772 = vpop.permute.xlu0 %771
        %v774 = vadd.f32 %v763, %v772
        %776 = vrot.lane.b32.xlu0 %v774, 64
        %v777 = vpop.permute.xlu0 %776
        %779 = vst.msk [vmem:[#allocation2] sm:$0xff] %vm372, %v777
        %p780 = scmp.eq.s32.totalorder %s27, 1
        // Predicated region
        $region61: #{tpu_custom_call.1} parent=47 // pred_check
          %p781 = pneg %p780
        $region62: #{tpu_custom_call.1} parent=47 // pred_check_branch
          %783 = sbr.rel (%p781) target = $region64
        $region63: #{tpu_custom_call.1} parent=47 // pred_region
          %v784 = vld [vmem:[#allocation2] sm:$0xff]
          %v785 = vpack.c.bf16 %v784, %v784
          %v786 = vld [vmem:[%s5] sm:$0xf]
          %v787 = vld [vmem:[%s5 + $0x4] sm:$0xf]
          %v788 = vld [vmem:[%s5 + $0x8] sm:$0xf]
          %v789 = vld [vmem:[%s5 + $0xc] sm:$0xf]
          %v790 = vld [vmem:[%s6] sm:$0x1]
          %v792 = vlaneseq
          %v793 = vshrl.u32 %v792, 7
          %v794 = vsub.s32 0, %v793
          %v795 = vrot.slane %v790, %v794
          %v801 = vunpack.c.l.b16 %v786
          %v802 = vunpack.c.l.b16 %v787
          %v803 = vunpack.c.l.b16 %v788
          %v804 = vunpack.c.l.b16 %v789
          %v805 = vpack.c.b16 %v802, %v801
          %v806 = vpack.c.b16 %v804, %v803
          %v810 = vsel %vm372, %v785, 0
          %812 = vmatprep.subr.bf16.mxu0 0
          %813 = vmatpush1.bf16.msra.mxu0 0
          %814 = vmatprep.subr.bf16.mxu0 0
          %815 = vmatpush1.bf16.msra.mxu0 0
          %816 = vmatprep.subr.bf16.mxu0 0
          %817 = vmatpush1.bf16.msra.mxu0 0
          %818 = vmatprep.subr.bf16.mxu0 0
          %819 = vmatpush1.bf16.msra.mxu0 0
          %820 = vmatprep.subr.bf16.mxu0 0
          %821 = vmatpush1.bf16.msra.mxu0 0
          %822 = vmatprep.subr.bf16.mxu0 0
          %823 = vmatpush1.bf16.msra.mxu0 0
          %824 = vmatprep.subr.bf16.mxu0 0
          %825 = vmatpush1.bf16.msra.mxu0 %v806
          %826 = vmatprep.subr.bf16.mxu0 0
          %827 = vmatpush1.bf16.msra.mxu0 %v805
          %828 = vmatprep.subr.bf16.mxu0 0
          %829 = vmatpush2.bf16.msra.mxu0 0
          %830 = vmatprep.subr.bf16.mxu0 0
          %831 = vmatpush2.bf16.msra.mxu0 0
          %832 = vmatprep.subr.bf16.mxu0 0
          %833 = vmatpush2.bf16.msra.mxu0 0
          %834 = vmatprep.subr.bf16.mxu0 0
          %835 = vmatpush2.bf16.msra.mxu0 0
          %836 = vmatprep.subr.bf16.mxu0 0
          %837 = vmatpush2.bf16.msra.mxu0 0
          %838 = vmatprep.subr.bf16.mxu0 0
          %839 = vmatpush2.bf16.msra.mxu0 0
          %840 = vmatprep.subr.bf16.mxu0 0
          %841 = vmatpush2.bf16.msra.mxu0 0
          %842 = vmatprep.subr.bf16.mxu0 0
          %843 = vmatpush2.bf16.msra.mxu0 0
          %844 = vmatprep.mubr.bf16.mxu0 0
          %845 = vmatmul.mubr.bf16.gmra.mxu0 %v810
          %v846 = vpop.f32.mrf.mxu0
          %v847 = vadd.f32 %v795, %v846
          %v848 = vpop.f32.mrf.mxu0
          %v849 = vpop.f32.mrf.mxu0
          %v850 = vpop.f32.mrf.mxu0
          %851 = vdwg.mxu0
          %v852 = vxor.u32 %v847, 2147483648
          %v853 = vmul.f32 %v852, 1.442695
          %v854 = vpow.pop %v853
          %v855 = vadd.f32 %v854, 1.0
          %v856 = vrcp.pop %v855
          %v857 = vmul.f32 1.0, %v856
          %vm858 = vcmask 31744
          %859 = vst.msk [vmem:[%s327] sm:$0xff] %vm858, %v857
        $region64: #{tpu_custom_call.1} parent=47 // pred_fallthru
          _
        %p860 = scmp.lt.s32.totalorder %s26, 0
        %s861 = scalar_select %p860, %s26, 0
        %s862 = smul.addr %s861, 8
        %s863 = scalar_lea.vmem %s7, %s862
        // Predicated region
        $region65: #{tpu_custom_call.1} parent=47 // pred_check
          %p864 = pneg %p206
        $region66: #{tpu_custom_call.1} parent=47 // pred_check_branch
          %866 = sbr.rel (%p864) target = $region68
        $region67: #{tpu_custom_call.1} parent=47 // pred_region
          _
        $region68: #{tpu_custom_call.1} parent=47 // pred_fallthru
          _
        // Predicated region
        $region69: #{tpu_custom_call.1} parent=47 // pred_check
          %p867 = pneg %p206
        $region70: #{tpu_custom_call.1} parent=47 // pred_check_branch
          %869 = sbr.rel (%p867) target = $region72
        $region71: #{tpu_custom_call.1} parent=47 // pred_region
          %p870 = scmp.lt.s32.totalorder %s26, 0
          %s871 = scalar_select %p870, %s26, 0
          %s872 = smul.addr %s871, 8
          %s873 = scalar_lea.vmem %s7, %s872
        $region72: #{tpu_custom_call.1} parent=47 // pred_fallthru
          _
      $region48: #{tpu_custom_call.1} parent=5 // pred_fallthru
        _
      %p874 = scmp.le.s32.totalorder 2, %s17
      // Predicated region
      $region73: #{tpu_custom_call.1} parent=5 // pred_check
        %p875 = pneg %p874
      $region74: #{tpu_custom_call.1} parent=5 // pred_check_branch
        %877 = sbr.rel (%p875) target = $region76
      $region75: #{tpu_custom_call.1} parent=5 // pred_region
        %s878 = ssub.s32 %s17, 2
      $region76: #{tpu_custom_call.1} parent=5 // pred_fallthru
        _
    $region6: #{tpu_custom_call.1} parent=1 // loop_footer
      %s21 = sadd.s32 1, %s17
    $region7: #{tpu_custom_call.1} parent=1 // loop_footer_branch
      %16 = sbr.rel target = $region3
    $region8: #{tpu_custom_call.1} parent=1 // loop_exit
      _
    %879 = vsyncpa [#allocation5], 1
    %s880 = scalar_lea.sflag [#allocation5], 1
    %881 = vsyncpa %s880, 1
    %882 = vsyncpa [#allocation7], 1

</llo_original>
